<compile_context>
chip_gen: v7x
topology: tpu7x:2x2x1
jax: 0.10.0
libtpu: 0.0.40
codegen_flags: <defaults>
</compile_context>

<pallas_src>
import functools

import jax
import jax.numpy as jnp
from jax.experimental import pallas as pl
from jax.experimental.pallas import tpu as pltpu


def _round_up(x, m):
    return (x + m - 1) // m * m


def _cdiv(a, b):
    return -(-a // b)


def _dice_kernel(s_ref, t_ref, o_ref, *, n_classes, c_pad, fuse_softmax,
                 tr, blocks_per_split, rows_total, ragged, mask_probs,
                 approx_recip):
    b = pl.program_id(2)

    @pl.when(b == 0)
    def _init():
        o_ref[...] = jnp.zeros_like(o_ref)

    t = t_ref[0]                                   # (tr, 128) integer labels
    if t.dtype != jnp.int32:
        t = t.astype(jnp.int32)

    row_valid = None
    if ragged:
        # Rows past the true extent (partial last block or the duplicated
        # block of an uneven split) hold unspecified data; neutralise their
        # labels so the one-hot terms vanish.
        s_idx = pl.program_id(1)
        row0 = (s_idx * blocks_per_split + b) * tr
        row_id = row0 + jax.lax.broadcasted_iota(jnp.int32, (tr, 128), 0)
        row_valid = row_id < rows_total
        t = jnp.where(row_valid, t, -1)

    if fuse_softmax:
        # Streaming max / denominator over the class axis: only (tr, 128)
        # temps stay live; exp is recomputed per class below (spare EUP slot)
        # instead of materialising a (C, tr, 128) intermediate.
        m = s_ref[0, 0].astype(jnp.float32)
        for c in range(1, n_classes):
            m = jnp.maximum(m, s_ref[0, c].astype(jnp.float32))
        denom = jnp.exp(s_ref[0, 0].astype(jnp.float32) - m)
        for c in range(1, n_classes):
            denom = denom + jnp.exp(s_ref[0, c].astype(jnp.float32) - m)
        inv = pl.reciprocal(denom, approx=approx_recip)
        if mask_probs:
            valid = t >= 0           # covers wrapper padding + ragged rows

    inter_rows, ysum_rows, zsum_rows = [], [], []
    for c in range(n_classes):
        s_c = s_ref[0, c].astype(jnp.float32)
        if fuse_softmax:
            p_c = jnp.exp(s_c - m) * inv
            if mask_probs:
                # Select (not multiply) so NaN/Inf garbage in unused rows
                # cannot poison the sums.
                p_c = jnp.where(valid, p_c, 0.0)
        else:
            # Padded lanes already carry 0 scores; only ragged rows need a mask.
            p_c = jnp.where(row_valid, s_c, 0.0) if ragged else s_c

        oh_c = t == c
        inter_rows.append(jnp.sum(jnp.where(oh_c, p_c, 0.0), axis=0,
                                  keepdims=True))                  # (1, 128)
        ysum_rows.append(jnp.sum(oh_c.astype(jnp.float32), axis=0,
                                 keepdims=True))                   # t*t == t
        zsum_rows.append(jnp.sum(p_c * p_c, axis=0, keepdims=True))

    if c_pad > n_classes:
        zpad = jnp.zeros((c_pad - n_classes, 128), jnp.float32)
        inter_rows.append(zpad)
        ysum_rows.append(zpad)
        zsum_rows.append(zpad)

    upd = jnp.stack([jnp.concatenate(inter_rows, axis=0),
                     jnp.concatenate(ysum_rows, axis=0),
                     jnp.concatenate(zsum_rows, axis=0)], axis=0)  # (3, Cp, 128)
    o_ref[...] += upd[None, None]                  # resident, vreg-aligned


def _choose_tr(R, C, score_itemsize, sub, n_hint):
    """Rows per block: ~2 MiB of score data, multiple of `sub`, <= R."""
    budget = 2 * 1024 * 1024
    per_row = max(1, C * 128 * score_itemsize)
    cap = max(sub, min(2048, (budget // per_row) // sub * sub))
    tr = max(sub, min(cap, (R // sub) * sub))
    # Keep enough grid steps to hide the DMA prologue/epilogue (tiny grids
    # expose per-step overhead, especially when split across both v7x cores).
    while tr > sub and max(1, n_hint) * _cdiv(R, tr) < 8:
        tr = max(sub, (tr // 2) // sub * sub)
    return tr


def dice_loss(inputs, target, n_classes, weight=None, softmax=False,
              approx_recip=True):
    """Matches DiceLoss.forward(inputs, target, weight, softmax)."""
    N, C, H, W = inputs.shape
    assert C == n_classes, "predict & target shape do not match"
    assert target.shape == (N, H, W)

    HW = H * W
    score = inputs.reshape(N, C, HW)               # free reshape, native dtype
    if not jnp.issubdtype(score.dtype, jnp.floating):
        score = score.astype(jnp.float32)
    labels = target.reshape(N, HW)                 # native integer dtype
    if not jnp.issubdtype(labels.dtype, jnp.integer):
        labels = labels.astype(jnp.int32)

    itemsize_s = jnp.dtype(score.dtype).itemsize
    itemsize_t = jnp.dtype(labels.dtype).itemsize
    sub = max({4: 8, 2: 16, 1: 32}.get(itemsize_s, 8),
              {4: 8, 2: 16, 1: 32}.get(itemsize_t, 8))

    # Minimal padding: only to a full 128-lane row (and, for tiny images, to
    # `sub` rows so one block never exceeds the array). Never pad to a full
    # tile: ragged blocks are masked in-kernel instead.
    HWp = _round_up(HW, 128)
    if HWp // 128 < sub:
        HWp = sub * 128
    pad = HWp - HW
    if pad:
        score = jnp.pad(score, ((0, 0), (0, 0), (0, pad)))                # 0 scores
        labels = jnp.pad(labels, ((0, 0), (0, pad)), constant_values=-1)  # no class
    R = HWp // 128
    score = score.reshape(N, C, R, 128)
    labels = labels.reshape(N, R, 128)

    tr = _choose_tr(R, C, itemsize_s, sub, N)
    Rb = _cdiv(R, tr)                # row-blocks per image
    S = 2 if Rb >= 2 else 1          # second parallel axis (v7x megacore)
    B = _cdiv(Rb, S)                 # row-blocks per split
    clamp = S * B > Rb
    ragged = not (S * B == Rb and R % tr == 0)
    mask_probs = bool(softmax) and (ragged or pad > 0)
    Cp = _round_up(max(C, 1), 8)     # lane/sublane-aligned accumulator rows

    def _rb(s, b):
        rb = s * B + b
        return jnp.minimum(rb, Rb - 1) if clamp else rb

    kernel = functools.partial(
        _dice_kernel, n_classes=C, c_pad=Cp, fuse_softmax=bool(softmax),
        tr=tr, blocks_per_split=B, rows_total=R, ragged=ragged,
        mask_probs=mask_probs, approx_recip=approx_recip)

    partials = pl.pallas_call(
        kernel,
        out_shape=jax.ShapeDtypeStruct((N, S, 3, Cp, 128), jnp.float32),
        grid_spec=pltpu.PrefetchScalarGridSpec(
            num_scalar_prefetch=0,
            grid=(N, S, B),
            in_specs=[
                pl.BlockSpec((1, C, tr, 128),
                             lambda n, s, b: (n, 0, _rb(s, b), 0)),
                pl.BlockSpec((1, tr, 128),
                             lambda n, s, b: (n, _rb(s, b), 0)),
            ],
            out_specs=pl.BlockSpec((1, 1, 3, Cp, 128),
                                   lambda n, s, b: (n, s, 0, 0, 0)),
        ),
        # ~2 MiB double-buffered score blocks + small temps stay well inside
        # the 16 MiB v5e scoped-VMEM default; no explicit limit needed.
        compiler_params=pltpu.CompilerParams(
            dimension_semantics=("parallel", "parallel", "arbitrary")),
    )(score, labels)

    totals = jnp.sum(partials, axis=(0, 1, 4))     # (3, Cp)
    intersect = totals[0, :C]
    y_sum = totals[1, :C]
    z_sum = totals[2, :C]

    smooth = 1e-05
    dice = 1.0 - (2.0 * intersect + smooth) / (z_sum + y_sum + smooth)

    if weight is None:
        w = jnp.ones((C,), jnp.float32)
    else:
        w = jnp.asarray(weight, jnp.float32)
    return jnp.sum(dice * w) / n_classes


def _reference_loss(inputs, target, n_classes, weight=None, softmax=False):
    """Pure-JAX replica of the PyTorch module for verification."""
    x = inputs.astype(jnp.float32)
    if softmax:
        x = jax.nn.softmax(x, axis=1)
    onehot = (target[:, None, :, :] ==
              jnp.arange(n_classes)[None, :, None, None]).astype(jnp.float32)
    smooth = 1e-05
    if weight is None:
        weight = [1.0] * n_classes
    loss = 0.0
    for i in range(n_classes):
        s = x[:, i]
        t = onehot[:, i]
        inter = jnp.sum(s * t)
        y = jnp.sum(t * t)
        z = jnp.sum(s * s)
        loss = loss + (1.0 - (2.0 * inter + smooth) / (z + y + smooth)) * weight[i]
    return loss / n_classes


if __name__ == "__main__":
    key = jax.random.PRNGKey(0)
    k1, k2, k3, k4 = jax.random.split(key, 4)

    # Case 1: fused-softmax path (wrapper padding masked in-kernel).
    N, C, H, W = 2, 4, 16, 16
    inputs = jax.random.normal(k1, (N, C, H, W), dtype=jnp.float32)
    target = jax.random.randint(k2, (N, H, W), 0, C, dtype=jnp.int32)
    loss = jax.block_until_ready(dice_loss(inputs, target, n_classes=C, softmax=True))
    ref = jax.block_until_ready(_reference_loss(inputs, target, C, softmax=True))
    # approx reciprocal (~1e-4 rel err) -> relaxed tolerance.
    assert jnp.allclose(loss, ref, rtol=1e-3, atol=1e-3), (loss, ref)

    # Case 2: softmax=False with explicit class weights (exact arithmetic).
    wts = [1.0, 2.0, 0.5, 1.0]
    loss2 = jax.block_until_ready(
        dice_loss(inputs, target, n_classes=C, weight=wts, softmax=False))
    ref2 = jax.block_until_ready(
        _reference_loss(inputs, target, C, weight=wts, softmax=False))
    assert jnp.allclose(loss2, ref2, rtol=1e-5, atol=1e-5), (loss2, ref2)

    # Case 3: ragged row-blocks + 2-way split grid (in-kernel tail masking,
    # clamped duplicate block fully masked).
    N3, C3, H3, W3 = 1, 3, 48, 48
    inputs3 = jax.random.normal(k3, (N3, C3, H3, W3), dtype=jnp.float32)
    target3 = jax.random.randint(k4, (N3, H3, W3), 0, C3, dtype=jnp.int32)
    loss3 = jax.block_until_ready(dice_loss(inputs3, target3, n_classes=C3, softmax=True))
    ref3 = jax.block_until_ready(_reference_loss(inputs3, target3, C3, softmax=True))
    assert jnp.allclose(loss3, ref3, rtol=1e-3, atol=1e-3), (loss3, ref3)

    print("KERNEL_OK")
</pallas_src>

<mosaic_0001>
module attributes {stable_mosaic.version = 11 : i64} {
  func.func @_dice_kernel(%arg0: i32, %arg1: i32, %arg2: i32, %arg3: memref<1x4x8x128xf32, #tpu.memory_space<vmem>>, %arg4: memref<1x8x128xi32, #tpu.memory_space<vmem>>, %arg5: memref<1x1x3x8x128xf32, #tpu.memory_space<vmem>>) attributes {dimension_semantics = [#tpu.dimension_semantics<parallel>, #tpu.dimension_semantics<parallel>, #tpu.dimension_semantics<arbitrary>], iteration_bounds = array<i64: 2, 1, 1>, scalar_prefetch = 0 : i64, scratch_operands = 0 : i64, tpu.core_type = #tpu.core_type<tc>, window_params = [{transform_indices = @transform_0, window_bounds = array<i64: 1, 4, 8, 128>}, {transform_indices = @transform_1, window_bounds = array<i64: 1, 8, 128>}, {transform_indices = @transform_2, window_bounds = array<i64: 1, 1, 3, 8, 128>}]} {
    %c0_i32 = arith.constant 0 : i32
    %0 = arith.cmpi eq, %arg2, %c0_i32 : i32
    %1 = arith.extui %0 : i1 to i32
    %c0_i32_0 = arith.constant 0 : i32
    %2 = arith.cmpi ne, %1, %c0_i32_0 : i32
    scf.if %2 {
      %cst_80 = arith.constant 0.000000e+00 : f32
      %130 = vector.broadcast %cst_80 : f32 to vector<1x1x3x8x128xf32>
      %c0_81 = arith.constant 0 : index
      %c0_82 = arith.constant 0 : index
      %c0_83 = arith.constant 0 : index
      %c0_84 = arith.constant 0 : index
      %c0_85 = arith.constant 0 : index
      %131 = vector.load %arg5[%c0_81, %c0_82, %c0_83, %c0_84, %c0_85] : memref<1x1x3x8x128xf32, #tpu.memory_space<vmem>>, vector<1x1x3x8x128xf32>
      tpu.vector_store %arg5[%c0_81, %c0_82, %c0_83, %c0_84, %c0_85], %130 {strides = array<i32>} : memref<1x1x3x8x128xf32, #tpu.memory_space<vmem>>, vector<1x1x3x8x128xf32>,
    } else {
    }
    %c0 = arith.constant 0 : index
    %c0_1 = arith.constant 0 : index
    %c0_2 = arith.constant 0 : index
    %3 = vector.load %arg4[%c0, %c0_1, %c0_2] : memref<1x8x128xi32, #tpu.memory_space<vmem>>, vector<1x8x128xi32>
    %4 = vector.shape_cast %3 : vector<1x8x128xi32> to vector<8x128xi32>
    %c0_3 = arith.constant 0 : index
    %c0_4 = arith.constant 0 : index
    %c0_5 = arith.constant 0 : index
    %c0_6 = arith.constant 0 : index
    %5 = vector.load %arg3[%c0_3, %c0_4, %c0_5, %c0_6] : memref<1x4x8x128xf32, #tpu.memory_space<vmem>>, vector<1x1x8x128xf32>
    %6 = vector.shape_cast %5 : vector<1x1x8x128xf32> to vector<8x128xf32>
    %c0_7 = arith.constant 0 : index
    %c1 = arith.constant 1 : index
    %c0_8 = arith.constant 0 : index
    %c0_9 = arith.constant 0 : index
    %7 = vector.load %arg3[%c0_7, %c1, %c0_8, %c0_9] : memref<1x4x8x128xf32, #tpu.memory_space<vmem>>, vector<1x1x8x128xf32>
    %8 = vector.shape_cast %7 : vector<1x1x8x128xf32> to vector<8x128xf32>
    %9 = arith.maximumf %6, %8 : vector<8x128xf32>
    %c0_10 = arith.constant 0 : index
    %c2 = arith.constant 2 : index
    %c0_11 = arith.constant 0 : index
    %c0_12 = arith.constant 0 : index
    %10 = vector.load %arg3[%c0_10, %c2, %c0_11, %c0_12] : memref<1x4x8x128xf32, #tpu.memory_space<vmem>>, vector<1x1x8x128xf32>
    %11 = vector.shape_cast %10 : vector<1x1x8x128xf32> to vector<8x128xf32>
    %12 = arith.maximumf %9, %11 : vector<8x128xf32>
    %c0_13 = arith.constant 0 : index
    %c3 = arith.constant 3 : index
    %c0_14 = arith.constant 0 : index
    %c0_15 = arith.constant 0 : index
    %13 = vector.load %arg3[%c0_13, %c3, %c0_14, %c0_15] : memref<1x4x8x128xf32, #tpu.memory_space<vmem>>, vector<1x1x8x128xf32>
    %14 = vector.shape_cast %13 : vector<1x1x8x128xf32> to vector<8x128xf32>
    %15 = arith.maximumf %12, %14 : vector<8x128xf32>
    %c0_16 = arith.constant 0 : index
    %c0_17 = arith.constant 0 : index
    %c0_18 = arith.constant 0 : index
    %c0_19 = arith.constant 0 : index
    %16 = vector.load %arg3[%c0_16, %c0_17, %c0_18, %c0_19] : memref<1x4x8x128xf32, #tpu.memory_space<vmem>>, vector<1x1x8x128xf32>
    %17 = vector.shape_cast %16 : vector<1x1x8x128xf32> to vector<8x128xf32>
    %18 = arith.subf %17, %15 : vector<8x128xf32>
    %19 = math.exp %18 : vector<8x128xf32>
    %c0_20 = arith.constant 0 : index
    %c1_21 = arith.constant 1 : index
    %c0_22 = arith.constant 0 : index
    %c0_23 = arith.constant 0 : index
    %20 = vector.load %arg3[%c0_20, %c1_21, %c0_22, %c0_23] : memref<1x4x8x128xf32, #tpu.memory_space<vmem>>, vector<1x1x8x128xf32>
    %21 = vector.shape_cast %20 : vector<1x1x8x128xf32> to vector<8x128xf32>
    %22 = arith.subf %21, %15 : vector<8x128xf32>
    %23 = math.exp %22 : vector<8x128xf32>
    %24 = arith.addf %19, %23 : vector<8x128xf32>
    %c0_24 = arith.constant 0 : index
    %c2_25 = arith.constant 2 : index
    %c0_26 = arith.constant 0 : index
    %c0_27 = arith.constant 0 : index
    %25 = vector.load %arg3[%c0_24, %c2_25, %c0_26, %c0_27] : memref<1x4x8x128xf32, #tpu.memory_space<vmem>>, vector<1x1x8x128xf32>
    %26 = vector.shape_cast %25 : vector<1x1x8x128xf32> to vector<8x128xf32>
    %27 = arith.subf %26, %15 : vector<8x128xf32>
    %28 = math.exp %27 : vector<8x128xf32>
    %29 = arith.addf %24, %28 : vector<8x128xf32>
    %c0_28 = arith.constant 0 : index
    %c3_29 = arith.constant 3 : index
    %c0_30 = arith.constant 0 : index
    %c0_31 = arith.constant 0 : index
    %30 = vector.load %arg3[%c0_28, %c3_29, %c0_30, %c0_31] : memref<1x4x8x128xf32, #tpu.memory_space<vmem>>, vector<1x1x8x128xf32>
    %31 = vector.shape_cast %30 : vector<1x1x8x128xf32> to vector<8x128xf32>
    %32 = arith.subf %31, %15 : vector<8x128xf32>
    %33 = math.exp %32 : vector<8x128xf32>
    %34 = arith.addf %29, %33 : vector<8x128xf32>
    %35 = tpu.reciprocal %34 {approx = true} : vector<8x128xf32> -> vector<8x128xf32>
    %c0_i32_32 = arith.constant 0 : i32
    %36 = vector.broadcast %c0_i32_32 : i32 to vector<8x128xi32>
    %37 = arith.cmpi sge, %4, %36 : vector<8x128xi32>
    %c0_33 = arith.constant 0 : index
    %c0_34 = arith.constant 0 : index
    %c0_35 = arith.constant 0 : index
    %c0_36 = arith.constant 0 : index
    %38 = vector.load %arg3[%c0_33, %c0_34, %c0_35, %c0_36] : memref<1x4x8x128xf32, #tpu.memory_space<vmem>>, vector<1x1x8x128xf32>
    %39 = vector.shape_cast %38 : vector<1x1x8x128xf32> to vector<8x128xf32>
    %40 = arith.subf %39, %15 : vector<8x128xf32>
    %41 = math.exp %40 : vector<8x128xf32>
    %42 = arith.mulf %41, %35 : vector<8x128xf32>
    %cst = arith.constant 0.000000e+00 : f32
    %43 = vector.broadcast %cst : f32 to vector<8x128xf32>
    %44 = arith.select %37, %42, %43 : vector<8x128xi1>, vector<8x128xf32>
    %c0_i32_37 = arith.constant 0 : i32
    %45 = vector.broadcast %c0_i32_37 : i32 to vector<8x128xi32>
    %46 = arith.cmpi eq, %4, %45 : vector<8x128xi32>
    %cst_38 = arith.constant 0.000000e+00 : f32
    %47 = vector.broadcast %cst_38 : f32 to vector<8x128xf32>
    %48 = arith.select %46, %44, %47 : vector<8x128xi1>, vector<8x128xf32>
    %cst_39 = arith.constant dense<0.000000e+00> : vector<128xf32>
    %49 = vector.multi_reduction <add>, %48, %cst_39 [0] : vector<8x128xf32> to vector<128xf32>
    %50 = vector.shape_cast %49 : vector<128xf32> to vector<1x128xf32>
    %51 = arith.extui %46 : vector<8x128xi1> to vector<8x128xi32>
    %52 = arith.sitofp %51 : vector<8x128xi32> to vector<8x128xf32>
    %cst_40 = arith.constant dense<0.000000e+00> : vector<128xf32>
    %53 = vector.multi_reduction <add>, %52, %cst_40 [0] : vector<8x128xf32> to vector<128xf32>
    %54 = vector.shape_cast %53 : vector<128xf32> to vector<1x128xf32>
    %55 = arith.mulf %44, %44 : vector<8x128xf32>
    %cst_41 = arith.constant dense<0.000000e+00> : vector<128xf32>
    %56 = vector.multi_reduction <add>, %55, %cst_41 [0] : vector<8x128xf32> to vector<128xf32>
    %57 = vector.shape_cast %56 : vector<128xf32> to vector<1x128xf32>
    %c0_42 = arith.constant 0 : index
    %c1_43 = arith.constant 1 : index
    %c0_44 = arith.constant 0 : index
    %c0_45 = arith.constant 0 : index
    %58 = vector.load %arg3[%c0_42, %c1_43, %c0_44, %c0_45] : memref<1x4x8x128xf32, #tpu.memory_space<vmem>>, vector<1x1x8x128xf32>
    %59 = vector.shape_cast %58 : vector<1x1x8x128xf32> to vector<8x128xf32>
    %60 = arith.subf %59, %15 : vector<8x128xf32>
    %61 = math.exp %60 : vector<8x128xf32>
    %62 = arith.mulf %61, %35 : vector<8x128xf32>
    %cst_46 = arith.constant 0.000000e+00 : f32
    %63 = vector.broadcast %cst_46 : f32 to vector<8x128xf32>
    %64 = arith.select %37, %62, %63 : vector<8x128xi1>, vector<8x128xf32>
    %c1_i32 = arith.constant 1 : i32
    %65 = vector.broadcast %c1_i32 : i32 to vector<8x128xi32>
    %66 = arith.cmpi eq, %4, %65 : vector<8x128xi32>
    %cst_47 = arith.constant 0.000000e+00 : f32
    %67 = vector.broadcast %cst_47 : f32 to vector<8x128xf32>
    %68 = arith.select %66, %64, %67 : vector<8x128xi1>, vector<8x128xf32>
    %cst_48 = arith.constant dense<0.000000e+00> : vector<128xf32>
    %69 = vector.multi_reduction <add>, %68, %cst_48 [0] : vector<8x128xf32> to vector<128xf32>
    %70 = vector.shape_cast %69 : vector<128xf32> to vector<1x128xf32>
    %71 = arith.extui %66 : vector<8x128xi1> to vector<8x128xi32>
    %72 = arith.sitofp %71 : vector<8x128xi32> to vector<8x128xf32>
    %cst_49 = arith.constant dense<0.000000e+00> : vector<128xf32>
    %73 = vector.multi_reduction <add>, %72, %cst_49 [0] : vector<8x128xf32> to vector<128xf32>
    %74 = vector.shape_cast %73 : vector<128xf32> to vector<1x128xf32>
    %75 = arith.mulf %64, %64 : vector<8x128xf32>
    %cst_50 = arith.constant dense<0.000000e+00> : vector<128xf32>
    %76 = vector.multi_reduction <add>, %75, %cst_50 [0] : vector<8x128xf32> to vector<128xf32>
    %77 = vector.shape_cast %76 : vector<128xf32> to vector<1x128xf32>
    %c0_51 = arith.constant 0 : index
    %c2_52 = arith.constant 2 : index
    %c0_53 = arith.constant 0 : index
    %c0_54 = arith.constant 0 : index
    %78 = vector.load %arg3[%c0_51, %c2_52, %c0_53, %c0_54] : memref<1x4x8x128xf32, #tpu.memory_space<vmem>>, vector<1x1x8x128xf32>
    %79 = vector.shape_cast %78 : vector<1x1x8x128xf32> to vector<8x128xf32>
    %80 = arith.subf %79, %15 : vector<8x128xf32>
    %81 = math.exp %80 : vector<8x128xf32>
    %82 = arith.mulf %81, %35 : vector<8x128xf32>
    %cst_55 = arith.constant 0.000000e+00 : f32
    %83 = vector.broadcast %cst_55 : f32 to vector<8x128xf32>
    %84 = arith.select %37, %82, %83 : vector<8x128xi1>, vector<8x128xf32>
    %c2_i32 = arith.constant 2 : i32
    %85 = vector.broadcast %c2_i32 : i32 to vector<8x128xi32>
    %86 = arith.cmpi eq, %4, %85 : vector<8x128xi32>
    %cst_56 = arith.constant 0.000000e+00 : f32
    %87 = vector.broadcast %cst_56 : f32 to vector<8x128xf32>
    %88 = arith.select %86, %84, %87 : vector<8x128xi1>, vector<8x128xf32>
    %cst_57 = arith.constant dense<0.000000e+00> : vector<128xf32>
    %89 = vector.multi_reduction <add>, %88, %cst_57 [0] : vector<8x128xf32> to vector<128xf32>
    %90 = vector.shape_cast %89 : vector<128xf32> to vector<1x128xf32>
    %91 = arith.extui %86 : vector<8x128xi1> to vector<8x128xi32>
    %92 = arith.sitofp %91 : vector<8x128xi32> to vector<8x128xf32>
    %cst_58 = arith.constant dense<0.000000e+00> : vector<128xf32>
    %93 = vector.multi_reduction <add>, %92, %cst_58 [0] : vector<8x128xf32> to vector<128xf32>
    %94 = vector.shape_cast %93 : vector<128xf32> to vector<1x128xf32>
    %95 = arith.mulf %84, %84 : vector<8x128xf32>
    %cst_59 = arith.constant dense<0.000000e+00> : vector<128xf32>
    %96 = vector.multi_reduction <add>, %95, %cst_59 [0] : vector<8x128xf32> to vector<128xf32>
    %97 = vector.shape_cast %96 : vector<128xf32> to vector<1x128xf32>
    %c0_60 = arith.constant 0 : index
    %c3_61 = arith.constant 3 : index
    %c0_62 = arith.constant 0 : index
    %c0_63 = arith.constant 0 : index
    %98 = vector.load %arg3[%c0_60, %c3_61, %c0_62, %c0_63] : memref<1x4x8x128xf32, #tpu.memory_space<vmem>>, vector<1x1x8x128xf32>
    %99 = vector.shape_cast %98 : vector<1x1x8x128xf32> to vector<8x128xf32>
    %100 = arith.subf %99, %15 : vector<8x128xf32>
    %101 = math.exp %100 : vector<8x128xf32>
    %102 = arith.mulf %101, %35 : vector<8x128xf32>
    %cst_64 = arith.constant 0.000000e+00 : f32
    %103 = vector.broadcast %cst_64 : f32 to vector<8x128xf32>
    %104 = arith.select %37, %102, %103 : vector<8x128xi1>, vector<8x128xf32>
    %c3_i32 = arith.constant 3 : i32
    %105 = vector.broadcast %c3_i32 : i32 to vector<8x128xi32>
    %106 = arith.cmpi eq, %4, %105 : vector<8x128xi32>
    %cst_65 = arith.constant 0.000000e+00 : f32
    %107 = vector.broadcast %cst_65 : f32 to vector<8x128xf32>
    %108 = arith.select %106, %104, %107 : vector<8x128xi1>, vector<8x128xf32>
    %cst_66 = arith.constant dense<0.000000e+00> : vector<128xf32>
    %109 = vector.multi_reduction <add>, %108, %cst_66 [0] : vector<8x128xf32> to vector<128xf32>
    %110 = vector.shape_cast %109 : vector<128xf32> to vector<1x128xf32>
    %111 = arith.extui %106 : vector<8x128xi1> to vector<8x128xi32>
    %112 = arith.sitofp %111 : vector<8x128xi32> to vector<8x128xf32>
    %cst_67 = arith.constant dense<0.000000e+00> : vector<128xf32>
    %113 = vector.multi_reduction <add>, %112, %cst_67 [0] : vector<8x128xf32> to vector<128xf32>
    %114 = vector.shape_cast %113 : vector<128xf32> to vector<1x128xf32>
    %115 = arith.mulf %104, %104 : vector<8x128xf32>
    %cst_68 = arith.constant dense<0.000000e+00> : vector<128xf32>
    %116 = vector.multi_reduction <add>, %115, %cst_68 [0] : vector<8x128xf32> to vector<128xf32>
    %117 = vector.shape_cast %116 : vector<128xf32> to vector<1x128xf32>
    %cst_69 = arith.constant 0.000000e+00 : f32
    %118 = vector.broadcast %cst_69 : f32 to vector<4x128xf32>
    %119 = tpu.concatenate %50, %70, %90, %110, %118 in 0 : vector<1x128xf32>, vector<1x128xf32>, vector<1x128xf32>, vector<1x128xf32>, vector<4x128xf32> -> vector<8x128xf32>
    %120 = tpu.concatenate %54, %74, %94, %114, %118 in 0 : vector<1x128xf32>, vector<1x128xf32>, vector<1x128xf32>, vector<1x128xf32>, vector<4x128xf32> -> vector<8x128xf32>
    %121 = tpu.concatenate %57, %77, %97, %117, %118 in 0 : vector<1x128xf32>, vector<1x128xf32>, vector<1x128xf32>, vector<1x128xf32>, vector<4x128xf32> -> vector<8x128xf32>
    %122 = vector.shape_cast %119 : vector<8x128xf32> to vector<1x8x128xf32>
    %123 = vector.shape_cast %120 : vector<8x128xf32> to vector<1x8x128xf32>
    %124 = vector.shape_cast %121 : vector<8x128xf32> to vector<1x8x128xf32>
    %125 = tpu.concatenate %122, %123, %124 in 0 : vector<1x8x128xf32>, vector<1x8x128xf32>, vector<1x8x128xf32> -> vector<3x8x128xf32>
    %c0_70 = arith.constant 0 : index
    %c0_71 = arith.constant 0 : index
    %c0_72 = arith.constant 0 : index
    %c0_73 = arith.constant 0 : index
    %c0_74 = arith.constant 0 : index
    %126 = vector.load %arg5[%c0_70, %c0_71, %c0_72, %c0_73, %c0_74] : memref<1x1x3x8x128xf32, #tpu.memory_space<vmem>>, vector<1x1x3x8x128xf32>
    %127 = vector.shape_cast %125 : vector<3x8x128xf32> to vector<1x1x3x8x128xf32>
    %128 = arith.addf %126, %127 : vector<1x1x3x8x128xf32>
    %c0_75 = arith.constant 0 : index
    %c0_76 = arith.constant 0 : index
    %c0_77 = arith.constant 0 : index
    %c0_78 = arith.constant 0 : index
    %c0_79 = arith.constant 0 : index
    %129 = vector.load %arg5[%c0_75, %c0_76, %c0_77, %c0_78, %c0_79] : memref<1x1x3x8x128xf32, #tpu.memory_space<vmem>>, vector<1x1x3x8x128xf32>
    tpu.vector_store %arg5[%c0_75, %c0_76, %c0_77, %c0_78, %c0_79], %128 {strides = array<i32>} : memref<1x1x3x8x128xf32, #tpu.memory_space<vmem>>, vector<1x1x3x8x128xf32>,
    return
  }
  func.func @transform_0(%arg0: i32, %arg1: i32, %arg2: i32) -> (i32, i32, i32, i32) {
    %c1_i32 = arith.constant 1 : i32
    %0 = arith.muli %arg1, %c1_i32 : i32
    %1 = arith.addi %0, %arg2 : i32
    %c0_i32 = arith.constant 0 : i32
    %c0_i32_0 = arith.constant 0 : i32
    %c0_i32_1 = arith.constant 0 : i32
    return %arg0, %c0_i32, %1, %c0_i32_0 : i32, i32, i32, i32
  }
  func.func @transform_1(%arg0: i32, %arg1: i32, %arg2: i32) -> (i32, i32, i32) {
    %c1_i32 = arith.constant 1 : i32
    %0 = arith.muli %arg1, %c1_i32 : i32
    %1 = arith.addi %0, %arg2 : i32
    %c0_i32 = arith.constant 0 : i32
    %c0_i32_0 = arith.constant 0 : i32
    return %arg0, %1, %c0_i32 : i32, i32, i32
  }
  func.func @transform_2(%arg0: i32, %arg1: i32, %arg2: i32) -> (i32, i32, i32, i32, i32) {
    %c0_i32 = arith.constant 0 : i32
    %c0_i32_0 = arith.constant 0 : i32
    %c0_i32_1 = arith.constant 0 : i32
    %c0_i32_2 = arith.constant 0 : i32
    return %arg0, %arg1, %c0_i32, %c0_i32_0, %c0_i32_1 : i32, i32, i32, i32, i32
  }
}

</mosaic_0001>

<llo_original>
// kernel: tpu_custom_call.1
$region0: #{tpu_custom_call.1}
  #allocation0 [shape = 'u32[]', space=smem, size = 0x4, offset = 0x4, fixed_abs, tag = 'smem constant byte address 0x4 - core index']
  #allocation1 [shape = 'u32[144,128]{1,0:T(1,128)}', space=vmem, size = 0x12000, scoped, tag = 'internal scratch']
  %s0 = inlined_call_operand.hbm [shape: f32[2,4,8,128], index: 0, kind: input, shape index: {}]
  %s1 = inlined_call_operand.hbm [shape: s32[2,8,128], index: 1, kind: input, shape index: {}]
  %s2 = inlined_call_operand.hbm [shape: f32[2,1,3,8,128], index: 2, kind: output, shape index: {}]
  %s3 = sld [smem:[#allocation0]]
  $region53: #{tpu_custom_call.1} parent=0
    _
  %s5 = ssub.s32 1, %s3
  %s6 = scalar_select 0, %s5, %s3
  $region1: #{tpu_custom_call.1} parent=0
    #allocation2 [shape = 'u8[32768]{0}', space=vmem, size = 0x8000, scoped, tag = 'input window, operand 0']
    #allocation3 [shape = 's32[2]{0}', space=sflag, size = 0x8, scoped, tag = 'scoped memory for tpu_custom_call.1']
    #allocation4 [shape = 's32[2]{0}', space=sflag, size = 0x8, scoped, tag = 'scoped memory for tpu_custom_call.1']
    #allocation5 [shape = 'u8[8192]{0}', space=vmem, size = 0x2000, scoped, tag = 'input window, operand 1']
    #allocation6 [shape = 's32[2]{0}', space=sflag, size = 0x8, scoped, tag = 'scoped memory for tpu_custom_call.1']
    #allocation7 [shape = 'u8[24576]{0}', space=vmem, size = 0x6000, scoped, tag = 'output window, operand 0']
    %7 = vsyncpa [#allocation3], 0
    %s8 = scalar_lea.sflag [#allocation3], 1
    %9 = vsyncpa %s8, 0
    %10 = vsyncpa [#allocation6], 0
    %s11 = scalar_lea.sflag [#allocation6], 1
    %12 = vsyncpa %s11, 0
    %13 = vsyncpa [#allocation4], 0
    %s14 = scalar_lea.sflag [#allocation4], 1
    %15 = vsyncpa %s14, 0
    loop: start=0, step=1, limit=4
    $region2: #{tpu_custom_call.1} parent=1 // loop_pre_header
      _
    $region3: #{tpu_custom_call.1} parent=1 // loop_header
      %s17 = sphi 0, %s21
      %p18 = scmp.ge.s32.totalorder %s17, 4
      %s24 = sphi 0, %s43
      %s25 = sphi 0, %s39
      %s26 = sphi 0, %s35
      %s27 = sphi 0, %s24
      %s28 = sphi 0, %s25
      %s29 = sphi 0, %s26
      %s30 = sphi 0, %s27
      %s31 = sphi 0, %s28
      %s32 = sphi 0, %s29
      %s50 = sphi 0, %s52
      %s53 = sphi 0, %s50
      %s54 = sphi 0, %s53
      %s70 = sphi 0, %s54
      %s80 = sphi 0, %s82
      %s83 = sphi 0, %s80
      %s84 = sphi 0, %s83
      %s100 = sphi 0, %s84
      %s108 = sphi 0, %s110
      %s111 = sphi 0, %s108
      %s112 = sphi 0, %s111
      %s128 = sphi 0, %s112
    $region4: #{tpu_custom_call.1} parent=1 // loop_header_branch
      %20 = sbr.rel (%p18) target = $region8
    $region5: #{tpu_custom_call.1} parent=1 // loop_body
      %s22 = ssub.s32 %s17, 1
      %s23 = ssub.s32 %s17, 2
      %s33 = sadd.s32 1, %s26
      %p34 = scmp.ge.s32.totalorder %s33, 1
      %s35 = scalar_select %p34, 0, %s33
      %s36 = sadd.s32 1, %s25
      %s37 = scalar_select %p34, %s36, %s25
      %p38 = scmp.ge.s32.totalorder %s37, 1
      %s39 = scalar_select %p38, 0, %s37
      %s40 = sadd.s32 1, %s24
      %s41 = scalar_select %p38, %s40, %s24
      %p42 = scmp.ge.s32.totalorder %s41, 2
      %s43 = scalar_select %p42, 0, %s41
      %s44 = sadd.s32 %s25, %s26
      %s45 = sadd.s32 %s39, %s35
      %s46 = ssub.s32 %s24, %s43
      %s47 = ssub.s32 %s44, %s45
      %s48 = sor.u32 %s46, %s47
      %p49 = scmp.eq.s32.totalorder %s48, 0
      %s51 = sadd.s32 %s50, 1
      %s52 = scalar_select %p49, %s50, %s51
      %p55 = pneg %p49
      %p56 = scmp.eq.s32.totalorder %s17, 1
      %p57 = por %p55, %p56
      %p58 = scmp.ne.s32.totalorder %s50, %s53
      %p59 = scmp.eq.s32.totalorder %s17, 0
      %p60 = por %p58, %p59
      %p61 = scmp.ne.s32.totalorder %s50, %s53
      %p62 = scmp.eq.s32.totalorder %s22, 1
      %p63 = por %p61, %p62
      %p64 = scmp.ne.s32.totalorder %s53, %s54
      %p65 = scmp.eq.s32.totalorder %s22, 0
      %p66 = por %p64, %p65
      %p67 = scmp.ne.s32.totalorder %s53, %s54
      %p68 = scmp.eq.s32.totalorder %s23, 1
      %p69 = por %p67, %p68
      %p71 = scmp.ne.s32.totalorder %s54, %s70
      %p72 = scmp.eq.s32.totalorder %s23, 0
      %p73 = por %p71, %p72
      %s74 = sadd.s32 %s25, %s26
      %s75 = sadd.s32 %s39, %s35
      %s76 = ssub.s32 %s24, %s43
      %s77 = ssub.s32 %s74, %s75
      %s78 = sor.u32 %s76, %s77
      %p79 = scmp.eq.s32.totalorder %s78, 0
      %s81 = sadd.s32 %s80, 1
      %s82 = scalar_select %p79, %s80, %s81
      %p85 = pneg %p79
      %p86 = scmp.eq.s32.totalorder %s17, 1
      %p87 = por %p85, %p86
      %p88 = scmp.ne.s32.totalorder %s80, %s83
      %p89 = scmp.eq.s32.totalorder %s17, 0
      %p90 = por %p88, %p89
      %p91 = scmp.ne.s32.totalorder %s80, %s83
      %p92 = scmp.eq.s32.totalorder %s22, 1
      %p93 = por %p91, %p92
      %p94 = scmp.ne.s32.totalorder %s83, %s84
      %p95 = scmp.eq.s32.totalorder %s22, 0
      %p96 = por %p94, %p95
      %p97 = scmp.ne.s32.totalorder %s83, %s84
      %p98 = scmp.eq.s32.totalorder %s23, 1
      %p99 = por %p97, %p98
      %p101 = scmp.ne.s32.totalorder %s84, %s100
      %p102 = scmp.eq.s32.totalorder %s23, 0
      %p103 = por %p101, %p102
      %s104 = ssub.s32 %s24, %s43
      %s105 = ssub.s32 %s25, %s39
      %s106 = sor.u32 %s104, %s105
      %p107 = scmp.eq.s32.totalorder %s106, 0
      %s109 = sadd.s32 %s108, 1
      %s110 = scalar_select %p107, %s108, %s109
      %p113 = pneg %p107
      %p114 = scmp.eq.s32.totalorder %s17, 1
      %p115 = por %p113, %p114
      %p116 = scmp.ne.s32.totalorder %s108, %s111
      %p117 = scmp.eq.s32.totalorder %s17, 0
      %p118 = por %p116, %p117
      %p119 = scmp.ne.s32.totalorder %s108, %s111
      %p120 = scmp.eq.s32.totalorder %s22, 1
      %p121 = por %p119, %p120
      %p122 = scmp.ne.s32.totalorder %s111, %s112
      %p123 = scmp.eq.s32.totalorder %s22, 0
      %p124 = por %p122, %p123
      %p125 = scmp.ne.s32.totalorder %s111, %s112
      %p126 = scmp.eq.s32.totalorder %s23, 1
      %p127 = por %p125, %p126
      %p129 = scmp.ne.s32.totalorder %s112, %s128
      %p130 = scmp.eq.s32.totalorder %s23, 0
      %p131 = por %p129, %p130
      %p132 = scmp.le.s32.totalorder 1, %s17
      %p133 = scmp.lt.s32.totalorder %s17, 3
      %p134 = pnand %p132, %p133
      %p135 = pneg %p134
      // Predicated region
      $region9: #{tpu_custom_call.1} parent=5 // pred_check
        _
      $region10: #{tpu_custom_call.1} parent=5 // pred_check_branch
        %137 = sbr.rel (%p134) target = $region12
      $region11: #{tpu_custom_call.1} parent=5 // pred_region
        %s138 = ssub.s32 %s17, 1
      $region12: #{tpu_custom_call.1} parent=5 // pred_fallthru
        _
      %p139 = scmp.lt.s32.totalorder %s17, 2
      // Predicated region
      $region13: #{tpu_custom_call.1} parent=5 // pred_check
        %p140 = pneg %p139
      $region14: #{tpu_custom_call.1} parent=5 // pred_check_branch
        %142 = sbr.rel (%p140) target = $region16
      $region15: #{tpu_custom_call.1} parent=5 // pred_region
        // Predicated region
        $region17: #{tpu_custom_call.1} parent=15 // pred_check
          %p143 = pneg %p60
        $region18: #{tpu_custom_call.1} parent=15 // pred_check_branch
          %145 = sbr.rel (%p143) target = $region20
        $region19: #{tpu_custom_call.1} parent=15 // pred_region
          %s146 = sand.u32 %s50, 1
          %s147 = scalar_lea.sflag [#allocation3], %s146
          %s148 = sand.u32 %s50, 1
          %s149 = smul.addr %s148, 32
          %s150 = scalar_lea.vmem [#allocation2], %s149
          %s151 = sadd.s32 %s25, %s26
          %s153 = ssub.s32 512, 512
          %154 = vsyncadd %s147, %s153
          %s155 = smul.addr %s24, 4
          %s156 = sadd.s32 %s151, %s155
          %s157 = smul.addr %s156, 128
          %s158 = scalar_lea.hbm %s0, %s157
          %s159 = sshll.u32 %s150, 4
          %s160 = int_to_ptr.vmem [resolvable:$true] %s159
          %165 = dma.hbm_to_vmem [thread:$0]  %s158, 512, %s160, %s147, 128, 128, 8
        $region20: #{tpu_custom_call.1} parent=15 // pred_fallthru
          _
        // Predicated region
        $region21: #{tpu_custom_call.1} parent=15 // pred_check
          %p166 = pneg %p90
        $region22: #{tpu_custom_call.1} parent=15 // pred_check_branch
          %168 = sbr.rel (%p166) target = $region24
        $region23: #{tpu_custom_call.1} parent=15 // pred_region
          %s169 = sand.u32 %s80, 1
          %s170 = scalar_lea.sflag [#allocation6], %s169
          %s171 = sand.u32 %s80, 1
          %s172 = smul.addr %s171, 8
          %s173 = scalar_lea.vmem [#allocation5], %s172
          %s174 = sadd.s32 %s25, %s26
          %s176 = ssub.s32 128, 128
          %177 = vsyncadd %s170, %s176
          %s178 = sadd.s32 %s174, %s24
          %s179 = smul.addr %s178, 128
          %s180 = scalar_lea.hbm %s1, %s179
          %s182 = sshll.u32 %s173, 4
          %s183 = int_to_ptr.vmem [resolvable:$true] %s182
          %185 = dma.hbm_to_vmem [thread:$0]  %s180, 128, %s183, %s170
        $region24: #{tpu_custom_call.1} parent=15 // pred_fallthru
          _
      $region16: #{tpu_custom_call.1} parent=5 // pred_fallthru
        _
      %p186 = scmp.le.s32.totalorder 1, %s17
      %p187 = scmp.lt.s32.totalorder %s17, 3
      %p188 = pnand %p186, %p187
      %p189 = pneg %p188
      // Predicated region
      $region25: #{tpu_custom_call.1} parent=5 // pred_check
        _
      $region26: #{tpu_custom_call.1} parent=5 // pred_check_branch
        %191 = sbr.rel (%p188) target = $region28
      $region27: #{tpu_custom_call.1} parent=5 // pred_region
        %s192 = ssub.s32 %s17, 1
        %s193 = sand.u32 %s53, 1
        %s194 = scalar_lea.sflag [#allocation3], %s193
        %s195 = sand.u32 %s53, 1
        %s196 = smul.addr %s195, 32
        %s197 = scalar_lea.vmem [#allocation2], %s196
        // Predicated region
        $region29: #{tpu_custom_call.1} parent=27 // pred_check
          %p198 = pneg %p66
        $region30: #{tpu_custom_call.1} parent=27 // pred_check_branch
          %200 = sbr.rel (%p198) target = $region32
        $region31: #{tpu_custom_call.1} parent=27 // pred_region
          %201 = dma.done %s194, 512
        $region32: #{tpu_custom_call.1} parent=27 // pred_fallthru
          _
        %s202 = sand.u32 %s83, 1
        %s203 = scalar_lea.sflag [#allocation6], %s202
        %s204 = sand.u32 %s83, 1
        %s205 = smul.addr %s204, 8
        %s206 = scalar_lea.vmem [#allocation5], %s205
        // Predicated region
        $region33: #{tpu_custom_call.1} parent=27 // pred_check
          %p207 = pneg %p96
        $region34: #{tpu_custom_call.1} parent=27 // pred_check_branch
          %209 = sbr.rel (%p207) target = $region36
        $region35: #{tpu_custom_call.1} parent=27 // pred_region
          %210 = dma.done %s203, 128
        $region36: #{tpu_custom_call.1} parent=27 // pred_fallthru
          _
        %s211 = sand.u32 %s53, 1
        %s212 = scalar_lea.sflag [#allocation3], %s211
        %s213 = sand.u32 %s53, 1
        %s214 = smul.addr %s213, 32
        %s215 = scalar_lea.vmem [#allocation2], %s214
        %p216 = pneg %p66
        %p217 = pneg %p63
        %s218 = sand.u32 %s83, 1
        %s219 = scalar_lea.sflag [#allocation6], %s218
        %s220 = sand.u32 %s83, 1
        %s221 = smul.addr %s220, 8
        %s222 = scalar_lea.vmem [#allocation5], %s221
        %p223 = pneg %p96
        %p224 = pneg %p93
        %p225 = pneg %p124
        %p226 = pneg %p121
        %s227 = sand.u32 %s111, 1
        %s228 = scalar_lea.sflag [#allocation4], %s227
        %s229 = sand.u32 %s111, 1
        %s230 = smul.addr %s229, 24
        %s231 = scalar_lea.vmem [#allocation7], %s230
        %s232 = sadd.s32 %s28, %s29
        %s233 = sadd.s32 %s28, %s29
        %p234 = scmp.eq.s32.totalorder %s29, 0
        // Predicated region
        $region37: #{tpu_custom_call.1} parent=27 // pred_check
          %p235 = pneg %p234
        $region38: #{tpu_custom_call.1} parent=27 // pred_check_branch
          %237 = sbr.rel (%p235) target = $region40
        $region39: #{tpu_custom_call.1} parent=27 // pred_region
          %238 = vst [vmem:[%s231] sm:$0xff] 0.0
          %239 = vst [vmem:[%s231 + $0x8] sm:$0xff] 0.0
          %240 = vst [vmem:[%s231 + $0x10] sm:$0xff] 0.0
        $region40: #{tpu_custom_call.1} parent=27 // pred_fallthru
          _
        %v241 = vld [vmem:[%s206] sm:$0xff]
        %v242 = vld [vmem:[%s197] sm:$0xff]
        %s243 = scalar_lea.vmem %s197, 8 [#allocation2]
        %v244 = vld [vmem:[%s243] sm:$0xff]
        %v245 = vmax.f32 %v242, %v244
        %s246 = scalar_lea.vmem %s197, 16 [#allocation2]
        %v247 = vld [vmem:[%s246] sm:$0xff]
        %v248 = vmax.f32 %v245, %v247
        %s249 = scalar_lea.vmem %s197, 24 [#allocation2]
        %v250 = vld [vmem:[%s249] sm:$0xff]
        %v251 = vmax.f32 %v248, %v250
        %v252 = vsub.f32 %v242, %v251
        %v253 = vmul.f32 %v252, 1.442695
        %v254 = vpow.pop %v253
        %v255 = vsub.f32 %v244, %v251
        %v256 = vmul.f32 %v255, 1.442695
        %v257 = vpow.pop %v256
        %v258 = vadd.f32 %v254, %v257
        %v259 = vsub.f32 %v247, %v251
        %v260 = vmul.f32 %v259, 1.442695
        %v261 = vpow.pop %v260
        %v262 = vadd.f32 %v258, %v261
        %v263 = vsub.f32 %v250, %v251
        %v264 = vmul.f32 %v263, 1.442695
        %v265 = vpow.pop %v264
        %v266 = vadd.f32 %v262, %v265
        %v267 = vrcp.pop %v266
        %vm268 = vcmp.ge.s32.totalorder %v241, 0
        %v269 = vmul.f32 %v254, %v267
        %v270 = vsel %vm268, %v269, 0.0
        %vm271 = vcmp.eq.s32.totalorder %v241, 0
        %v272 = vsel %vm271, %v270, 0.0
        %v273 = vrot.slane %v272, 4
        %v274 = vadd.f32 %v272, %v273
        %v275 = vrot.slane %v274, 2
        %v276 = vadd.f32 %v274, %v275
        %v277 = vrot.slane %v276, 1
        %v278 = vadd.f32 %v276, %v277
        %v279 = vsel %vm271, 1, 0
        %v280 = vcvt.s32.f32 %v279
        %v281 = vrot.slane %v280, 4
        %v282 = vadd.f32 %v280, %v281
        %v283 = vrot.slane %v282, 2
        %v284 = vadd.f32 %v282, %v283
        %v285 = vrot.slane %v284, 1
        %v286 = vadd.f32 %v284, %v285
        %v287 = vmul.f32 %v270, %v270
        %v288 = vrot.slane %v287, 4
        %v289 = vadd.f32 %v287, %v288
        %v290 = vrot.slane %v289, 2
        %v291 = vadd.f32 %v289, %v290
        %v292 = vrot.slane %v291, 1
        %v293 = vadd.f32 %v291, %v292
        %v294 = vmul.f32 %v257, %v267
        %v295 = vsel %vm268, %v294, 0.0
        %vm296 = vcmp.eq.s32.totalorder %v241, 1
        %v297 = vsel %vm296, %v295, 0.0
        %v298 = vrot.slane %v297, 4
        %v299 = vadd.f32 %v297, %v298
        %v300 = vrot.slane %v299, 2
        %v301 = vadd.f32 %v299, %v300
        %v302 = vrot.slane %v301, 1
        %v303 = vadd.f32 %v301, %v302
        %v304 = vsel %vm296, 1, 0
        %v305 = vcvt.s32.f32 %v304
        %v306 = vrot.slane %v305, 4
        %v307 = vadd.f32 %v305, %v306
        %v308 = vrot.slane %v307, 2
        %v309 = vadd.f32 %v307, %v308
        %v310 = vrot.slane %v309, 1
        %v311 = vadd.f32 %v309, %v310
        %v312 = vmul.f32 %v295, %v295
        %v313 = vrot.slane %v312, 4
        %v314 = vadd.f32 %v312, %v313
        %v315 = vrot.slane %v314, 2
        %v316 = vadd.f32 %v314, %v315
        %v317 = vrot.slane %v316, 1
        %v318 = vadd.f32 %v316, %v317
        %v319 = vmul.f32 %v261, %v267
        %v320 = vsel %vm268, %v319, 0.0
        %vm321 = vcmp.eq.s32.totalorder %v241, 2
        %v322 = vsel %vm321, %v320, 0.0
        %v323 = vrot.slane %v322, 4
        %v324 = vadd.f32 %v322, %v323
        %v325 = vrot.slane %v324, 2
        %v326 = vadd.f32 %v324, %v325
        %v327 = vrot.slane %v326, 1
        %v328 = vadd.f32 %v326, %v327
        %v329 = vsel %vm321, 1, 0
        %v330 = vcvt.s32.f32 %v329
        %v331 = vrot.slane %v330, 4
        %v332 = vadd.f32 %v330, %v331
        %v333 = vrot.slane %v332, 2
        %v334 = vadd.f32 %v332, %v333
        %v335 = vrot.slane %v334, 1
        %v336 = vadd.f32 %v334, %v335
        %v337 = vmul.f32 %v320, %v320
        %v338 = vrot.slane %v337, 4
        %v339 = vadd.f32 %v337, %v338
        %v340 = vrot.slane %v339, 2
        %v341 = vadd.f32 %v339, %v340
        %v342 = vrot.slane %v341, 1
        %v343 = vadd.f32 %v341, %v342
        %v344 = vmul.f32 %v265, %v267
        %v345 = vsel %vm268, %v344, 0.0
        %vm346 = vcmp.eq.s32.totalorder %v241, 3
        %v347 = vsel %vm346, %v345, 0.0
        %v348 = vrot.slane %v347, 4
        %v349 = vadd.f32 %v347, %v348
        %v350 = vrot.slane %v349, 2
        %v351 = vadd.f32 %v349, %v350
        %v352 = vrot.slane %v351, 1
        %v353 = vadd.f32 %v351, %v352
        %v354 = vsel %vm346, 1, 0
        %v355 = vcvt.s32.f32 %v354
        %v356 = vrot.slane %v355, 4
        %v357 = vadd.f32 %v355, %v356
        %v358 = vrot.slane %v357, 2
        %v359 = vadd.f32 %v357, %v358
        %v360 = vrot.slane %v359, 1
        %v361 = vadd.f32 %v359, %v360
        %v362 = vmul.f32 %v345, %v345
        %v363 = vrot.slane %v362, 4
        %v364 = vadd.f32 %v362, %v363
        %v365 = vrot.slane %v364, 2
        %v366 = vadd.f32 %v364, %v365
        %v367 = vrot.slane %v366, 1
        %v368 = vadd.f32 %v366, %v367
        %vm369 = vcmask 1040384
        %v370 = vsel %vm369, %v278, %v303
        %vm371 = vcmask 1041408
        %v372 = vsel %vm371, %v370, %v328
        %vm373 = vcmask 1042432
        %v374 = vsel %vm373, %v372, %v353
        %vm375 = vcmask 1043456
        %v376 = vsel %vm375, %v374, 0.0
        %v377 = vsel %vm369, %v286, %v311
        %v378 = vsel %vm371, %v377, %v336
        %v379 = vsel %vm373, %v378, %v361
        %v380 = vsel %vm375, %v379, 0.0
        %v381 = vsel %vm369, %v293, %v318
        %v382 = vsel %vm371, %v381, %v343
        %v383 = vsel %vm373, %v382, %v368
        %v384 = vsel %vm375, %v383, 0.0
        %v385 = vld [vmem:[%s231] sm:$0xff]
        %v386 = vld [vmem:[%s231 + $0x8] sm:$0xff]
        %v387 = vld [vmem:[%s231 + $0x10] sm:$0xff]
        %v388 = vadd.f32 %v385, %v376
        %v389 = vadd.f32 %v386, %v380
        %v390 = vadd.f32 %v387, %v384
        %391 = vst [vmem:[%s231] sm:$0xff] %v388
        %392 = vst [vmem:[%s231 + $0x8] sm:$0xff] %v389
        %393 = vst [vmem:[%s231 + $0x10] sm:$0xff] %v390
        %s394 = sand.u32 %s111, 1
        %s395 = scalar_lea.sflag [#allocation4], %s394
        %s396 = sand.u32 %s111, 1
        %s397 = smul.addr %s396, 24
        %s398 = scalar_lea.vmem [#allocation7], %s397
        // Predicated region
        $region41: #{tpu_custom_call.1} parent=27 // pred_check
          %p399 = pneg %p121
        $region42: #{tpu_custom_call.1} parent=27 // pred_check_branch
          %401 = sbr.rel (%p399) target = $region44
        $region43: #{tpu_custom_call.1} parent=27 // pred_region
          %s403 = ssub.s32 384, 384
          %404 = vsyncadd %s395, %s403
          %s405 = smul.addr %s28, 3
          %s406 = smul.addr %s27, 3
          %s407 = sadd.s32 %s405, %s406
          %s408 = smul.addr %s407, 128
          %s409 = scalar_lea.hbm %s2, %s408
          %s410 = sshll.u32 %s398, 4
          %s411 = int_to_ptr.vmem [resolvable:$true] %s410
          %416 = dma.vmem_to_hbm [thread:$0]  %s411, 384, %s409, %s395, 128, 128, 8
        $region44: #{tpu_custom_call.1} parent=27 // pred_fallthru
          _
      $region28: #{tpu_custom_call.1} parent=5 // pred_fallthru
        _
      %p417 = scmp.le.s32.totalorder 2, %s17
      // Predicated region
      $region45: #{tpu_custom_call.1} parent=5 // pred_check
        %p418 = pneg %p417
      $region46: #{tpu_custom_call.1} parent=5 // pred_check_branch
        %420 = sbr.rel (%p418) target = $region48
      $region47: #{tpu_custom_call.1} parent=5 // pred_region
        %s421 = ssub.s32 %s17, 2
        // Predicated region
        $region49: #{tpu_custom_call.1} parent=47 // pred_check
          %p422 = pneg %p127
        $region50: #{tpu_custom_call.1} parent=47 // pred_check_branch
          %424 = sbr.rel (%p422) target = $region52
        $region51: #{tpu_custom_call.1} parent=47 // pred_region
          %s425 = sand.u32 %s112, 1
          %s426 = scalar_lea.sflag [#allocation4], %s425
          %s427 = sand.u32 %s112, 1
          %s428 = smul.addr %s427, 24
          %s429 = scalar_lea.vmem [#allocation7], %s428
          %430 = dma.done %s426, 384
        $region52: #{tpu_custom_call.1} parent=47 // pred_fallthru
          _
      $region48: #{tpu_custom_call.1} parent=5 // pred_fallthru
        _
    $region6: #{tpu_custom_call.1} parent=1 // loop_footer
      %s21 = sadd.s32 1, %s17
    $region7: #{tpu_custom_call.1} parent=1 // loop_footer_branch
      %16 = sbr.rel target = $region3
    $region8: #{tpu_custom_call.1} parent=1 // loop_exit
      _
    %431 = vsyncpa [#allocation3], 1
    %s432 = scalar_lea.sflag [#allocation3], 1
    %433 = vsyncpa %s432, 1
    %434 = vsyncpa [#allocation6], 1
    %s435 = scalar_lea.sflag [#allocation6], 1
    %436 = vsyncpa %s435, 1
    %437 = vsyncpa [#allocation4], 1
    %s438 = scalar_lea.sflag [#allocation4], 1
    %439 = vsyncpa %s438, 1

</llo_original>
